<compile_context>
chip_gen: v7x
topology: tpu7x:2x2x1
jax: 0.10.0
libtpu: 0.0.40
codegen_flags: <defaults>
</compile_context>

<pallas_src>
import functools

import jax
import jax.numpy as jnp
from jax.experimental import pallas as pl
from jax.experimental.pallas import tpu as pltpu


def _round_up(x: int, m: int) -> int:
    return ((x + m - 1) // m) * m


def _sublane_multiple(dtype) -> int:
    # f32 -> 8, bf16 -> 16, int8/fp8 -> 32 (packed sublane rule).
    itemsize = jnp.dtype(dtype).itemsize
    return max(8, 32 // itemsize)


def _choose_tile(dim: int, max_tile: int, candidates) -> int:
    """Pick a lane-aligned tile size minimizing padding waste for `dim`."""
    aligned = _round_up(dim, 128)
    if aligned <= max_tile:
        return aligned  # whole (padded) dim in a single tile, zero re-splits
    best_waste, best_tile = None, None
    for cand in candidates:
        waste = _round_up(dim, cand) - dim
        if best_waste is None or waste < best_waste:
            best_waste, best_tile = waste, cand
    return best_tile


def _linear_kernel(x_ref, w_ref, b_ref, o_ref, acc_ref):
    # x_ref:   (tm, tk)  activations tile
    # w_ref:   (tk, tn)  pre-transposed weight tile (D, C layout, lane = class)
    # b_ref:   (1,  tn)  bias tile
    # o_ref:   (tm, tn)  output logits tile
    # acc_ref: (tm, tn)  f32 accumulator scratch (resident across the K axis)
    k = pl.program_id(2)

    partial = jnp.dot(x_ref[...], w_ref[...], preferred_element_type=jnp.float32)

    @pl.when(k == 0)
    def _():
        # Fold the bias into the accumulator init: no zero-init pass, no
        # epilogue add.
        acc_ref[...] = b_ref[...].astype(jnp.float32) + partial

    @pl.when(k != 0)
    def _():
        acc_ref[...] += partial

    @pl.when(k == pl.num_programs(2) - 1)
    def _():
        o_ref[...] = acc_ref[...].astype(o_ref.dtype)


def make_linear_classifier(weight, bias, *, tm_max=512, tn_max=512, tk_max=1024,
                           vmem_limit_bytes=48 * 1024 * 1024):
    """Build a forward fn for  y = x @ weight.T + bias  (torch nn.Linear).

    weight: (C, D)  PyTorch layout.  Padded + transposed to (Dp, Cp) ONCE here.
    bias:   (C,)                      Padded to (1, Cp) ONCE here.
    Returns forward(x: (B, D)) -> (B, C).
    """
    C, D = weight.shape
    assert bias.shape == (C,)

    # Tile sizes for the class (N) and reduction (K) axes, minimizing padding
    # waste; 256-aligned candidates preferred for the v6e/v7x 2x256x256 MXU.
    tn = _choose_tile(C, tn_max, (512, 384, 256, 128))
    tk = _choose_tile(D, tk_max, (1024, 768, 512, 256))
    Cp = _round_up(C, tn)
    Dp = _round_up(D, tk)

    # One-time parameter prep (init/load time, NOT per forward call):
    # pad and transpose the weight so the class dim is the lane dim of the
    # stationary operand, and keep the bias as a lane-dense (1, Cp) row.
    w_t = jnp.asarray(jnp.pad(weight, ((0, Cp - C), (0, Dp - D))).T)  # (Dp, Cp)
    b_p = jnp.asarray(jnp.pad(bias, (0, Cp - C)).reshape(1, Cp))      # (1,  Cp)

    def forward(x):
        B, D_in = x.shape
        assert D_in == D, f"expected input_dim={D}, got {D_in}"

        # Batch tile: grow toward the full padded batch first (fewest passes
        # over the weight = dominant HBM stream); dtype-aware sublane rounding.
        sub = _sublane_multiple(x.dtype)
        tm = min(tm_max, _round_up(B, sub))
        Bp = _round_up(B, tm)

        # Only the (small) activation is padded per call.
        if Bp != B or Dp != D:
            x_p = jnp.pad(x, ((0, Bp - B), (0, Dp - D)))
        else:
            x_p = x

        grid = (Bp // tm, Cp // tn, Dp // tk)

        itemsize = jnp.dtype(x.dtype).itemsize
        cost = pl.CostEstimate(
            flops=2 * Bp * Cp * Dp,
            transcendentals=0,
            bytes_accessed=itemsize * (Bp * Dp + Cp * Dp + Bp * Cp) + 4 * Cp,
        )

        out_p = pl.pallas_call(
            _linear_kernel,
            out_shape=jax.ShapeDtypeStruct((Bp, Cp), x.dtype),
            grid_spec=pltpu.PrefetchScalarGridSpec(
                num_scalar_prefetch=0,
                grid=grid,
                in_specs=[
                    pl.BlockSpec((tm, tk), lambda i, j, k: (i, k)),   # x  (B, D)
                    pl.BlockSpec((tk, tn), lambda i, j, k: (k, j)),   # w  (D, C)
                    pl.BlockSpec((1, tn), lambda i, j, k: (0, j)),    # bias
                ],
                out_specs=pl.BlockSpec((tm, tn), lambda i, j, k: (i, j)),
                scratch_shapes=[pltpu.VMEM((tm, tn), jnp.float32)],
            ),
            compiler_params=pltpu.CompilerParams(
                dimension_semantics=("parallel", "parallel", "arbitrary"),
                vmem_limit_bytes=vmem_limit_bytes,
            ),
            cost_estimate=cost,
        )(x_p, w_t, b_p)

        return out_p[:B, :C]

    return forward


if __name__ == "__main__":
    # Small shapes implied by the module: flat features in, class logits out.
    batch, input_dim, num_classes = 8, 32, 10

    key = jax.random.PRNGKey(0)
    kx, kw, kb = jax.random.split(key, 3)

    # Deterministic PyTorch-style init: U(-1/sqrt(D), 1/sqrt(D))
    bound = 1.0 / (input_dim ** 0.5)
    weight = jax.random.uniform(kw, (num_classes, input_dim),
                                minval=-bound, maxval=bound,
                                dtype=jnp.float32)
    bias = jax.random.uniform(kb, (num_classes,),
                              minval=-bound, maxval=bound,
                              dtype=jnp.float32)
    x = jax.random.normal(kx, (batch, input_dim), dtype=jnp.float32)

    forward = make_linear_classifier(weight, bias)
    out = forward(x)
    out = jax.block_until_ready(out)

    # Sanity-check against plain JAX reference (nn.Linear semantics).
    ref = x @ weight.T + bias
    assert out.shape == (batch, num_classes)
    assert jnp.allclose(out, ref, atol=1e-5, rtol=1e-5)

    print("KERNEL_OK")
</pallas_src>

<mosaic_0001>
module attributes {stable_mosaic.version = 11 : i64} {
  func.func @_linear_kernel(%arg0: i32, %arg1: i32, %arg2: i32, %arg3: memref<8x128xf32, #tpu.memory_space<vmem>>, %arg4: memref<128x128xf32, #tpu.memory_space<vmem>>, %arg5: memref<1x128xf32, #tpu.memory_space<vmem>>, %arg6: memref<8x128xf32, #tpu.memory_space<vmem>>, %arg7: memref<8x128xf32, #tpu.memory_space<vmem>>) attributes {dimension_semantics = [#tpu.dimension_semantics<parallel>, #tpu.dimension_semantics<parallel>, #tpu.dimension_semantics<arbitrary>], iteration_bounds = array<i64: 1, 1, 1>, scalar_prefetch = 0 : i64, scratch_operands = 1 : i64, tpu.core_type = #tpu.core_type<tc>, window_params = [{transform_indices = @transform_0, window_bounds = array<i64: 8, 128>}, {transform_indices = @transform_1, window_bounds = array<i64: 128, 128>}, {transform_indices = @transform_2, window_bounds = array<i64: 1, 128>}, {transform_indices = @transform_3, window_bounds = array<i64: 8, 128>}]} {
    %c0 = arith.constant 0 : index
    %c0_0 = arith.constant 0 : index
    %0 = vector.load %arg3[%c0, %c0_0] : memref<8x128xf32, #tpu.memory_space<vmem>>, vector<8x128xf32>
    %c0_1 = arith.constant 0 : index
    %c0_2 = arith.constant 0 : index
    %1 = vector.load %arg4[%c0_1, %c0_2] : memref<128x128xf32, #tpu.memory_space<vmem>>, vector<128x128xf32>
    %cst = arith.constant dense<0.000000e+00> : vector<8x128xf32>
    %2 = tpu.matmul %0, %1, %cst {dimension_numbers = #tpu.dot_dimension_numbers<[1], [0], [0], [1], [0, 0, 1, 1], [], []>} : vector<8x128xf32>, vector<128x128xf32>, vector<8x128xf32> -> vector<8x128xf32>
    %c0_i32 = arith.constant 0 : i32
    %3 = arith.cmpi eq, %arg2, %c0_i32 : i32
    %4 = arith.extui %3 : i1 to i32
    %c0_i32_3 = arith.constant 0 : i32
    %5 = arith.cmpi ne, %4, %c0_i32_3 : i32
    scf.if %5 {
      %c0_8 = arith.constant 0 : index
      %c0_9 = arith.constant 0 : index
      %12 = vector.load %arg5[%c0_8, %c0_9] : memref<1x128xf32, #tpu.memory_space<vmem>>, vector<1x128xf32>
      %13 = vector.broadcast %12 : vector<1x128xf32> to vector<8x128xf32>
      %14 = arith.addf %13, %2 : vector<8x128xf32>
      %c0_10 = arith.constant 0 : index
      %c0_11 = arith.constant 0 : index
      %15 = vector.load %arg7[%c0_10, %c0_11] : memref<8x128xf32, #tpu.memory_space<vmem>>, vector<8x128xf32>
      tpu.vector_store %arg7[%c0_10, %c0_11], %14 {strides = array<i32>} : memref<8x128xf32, #tpu.memory_space<vmem>>, vector<8x128xf32>,
    } else {
    }
    %c0_i32_4 = arith.constant 0 : i32
    %6 = arith.cmpi ne, %arg2, %c0_i32_4 : i32
    %7 = arith.extui %6 : i1 to i32
    %c0_i32_5 = arith.constant 0 : i32
    %8 = arith.cmpi ne, %7, %c0_i32_5 : i32
    scf.if %8 {
      %c0_8 = arith.constant 0 : index
      %c0_9 = arith.constant 0 : index
      %12 = vector.load %arg7[%c0_8, %c0_9] : memref<8x128xf32, #tpu.memory_space<vmem>>, vector<8x128xf32>
      %13 = arith.addf %12, %2 : vector<8x128xf32>
      %c0_10 = arith.constant 0 : index
      %c0_11 = arith.constant 0 : index
      %14 = vector.load %arg7[%c0_10, %c0_11] : memref<8x128xf32, #tpu.memory_space<vmem>>, vector<8x128xf32>
      tpu.vector_store %arg7[%c0_10, %c0_11], %13 {strides = array<i32>} : memref<8x128xf32, #tpu.memory_space<vmem>>, vector<8x128xf32>,
    } else {
    }
    %c0_i32_6 = arith.constant 0 : i32
    %9 = arith.cmpi eq, %arg2, %c0_i32_6 : i32
    %10 = arith.extui %9 : i1 to i32
    %c0_i32_7 = arith.constant 0 : i32
    %11 = arith.cmpi ne, %10, %c0_i32_7 : i32
    scf.if %11 {
      %c0_8 = arith.constant 0 : index
      %c0_9 = arith.constant 0 : index
      %12 = vector.load %arg7[%c0_8, %c0_9] : memref<8x128xf32, #tpu.memory_space<vmem>>, vector<8x128xf32>
      %c0_10 = arith.constant 0 : index
      %c0_11 = arith.constant 0 : index
      %13 = vector.load %arg6[%c0_10, %c0_11] : memref<8x128xf32, #tpu.memory_space<vmem>>, vector<8x128xf32>
      tpu.vector_store %arg6[%c0_10, %c0_11], %12 {strides = array<i32>} : memref<8x128xf32, #tpu.memory_space<vmem>>, vector<8x128xf32>,
    } else {
    }
    return
  }
  func.func @transform_0(%arg0: i32, %arg1: i32, %arg2: i32) -> (i32, i32) {
    %c0_i32 = arith.constant 0 : i32
    return %arg0, %arg2 : i32, i32
  }
  func.func @transform_1(%arg0: i32, %arg1: i32, %arg2: i32) -> (i32, i32) {
    %c0_i32 = arith.constant 0 : i32
    return %arg2, %arg1 : i32, i32
  }
  func.func @transform_2(%arg0: i32, %arg1: i32, %arg2: i32) -> (i32, i32) {
    %c0_i32 = arith.constant 0 : i32
    %c0_i32_0 = arith.constant 0 : i32
    return %c0_i32, %arg1 : i32, i32
  }
  func.func @transform_3(%arg0: i32, %arg1: i32, %arg2: i32) -> (i32, i32) {
    %c0_i32 = arith.constant 0 : i32
    return %arg0, %arg1 : i32, i32
  }
}

</mosaic_0001>

<llo_original>
// kernel: tpu_custom_call.1
$region0: #{tpu_custom_call.1}
  #allocation0 [shape = 'u32[]', space=smem, size = 0x4, offset = 0x4, fixed_abs, tag = 'smem constant byte address 0x4 - core index']
  #allocation1 [shape = 'u32[144,128]{1,0:T(1,128)}', space=vmem, size = 0x12000, scoped, tag = 'internal scratch']
  #allocation2 [shape = 'f32[8,128]{1,0:T(8,128)}', space=vmem, size = 0x1000, scoped, tag = 'scratch operand']
  %s0 = inlined_call_operand.hbm [shape: f32[8,128], index: 0, kind: input, shape index: {}]
  %s1 = inlined_call_operand.hbm [shape: f32[128,128], index: 1, kind: input, shape index: {}]
  %s2 = inlined_call_operand.vmem [shape: f32[1,128], index: 2, kind: input, shape index: {}]
  %s3 = inlined_call_operand.hbm [shape: f32[8,128], index: 3, kind: output, shape index: {}]
  %s4 = sld [smem:[#allocation0]]
  $region42: #{tpu_custom_call.1} parent=0
    _
  %s6 = ssub.s32 1, %s4
  %s7 = scalar_select 0, %s6, %s4
  $region1: #{tpu_custom_call.1} parent=0
    #allocation3 [shape = 'u8[4096]{0}', space=vmem, size = 0x1000, scoped, tag = 'input window, operand 0, single buffered']
    #allocation4 [shape = 's32[1]{0}', space=sflag, size = 0x4, scoped, tag = 'scoped memory for tpu_custom_call.1']
    #allocation5 [shape = 's32[1]{0}', space=sflag, size = 0x4, scoped, tag = 'scoped memory for tpu_custom_call.1']
    #allocation6 [shape = 'u8[65536]{0}', space=vmem, size = 0x10000, scoped, tag = 'input window, operand 1, single buffered']
    #allocation7 [shape = 's32[1]{0}', space=sflag, size = 0x4, scoped, tag = 'scoped memory for tpu_custom_call.1']
    #allocation8 [shape = 'u8[4096]{0}', space=vmem, size = 0x1000, scoped, tag = 'output window, operand 0, single buffered']
    %8 = vsyncpa [#allocation4], 0
    %9 = vsyncpa [#allocation7], 0
    %10 = vsyncpa [#allocation5], 0
    // Predicated region
    $region2: #{tpu_custom_call.1} parent=1 // pred_check
      _
    $region3: #{tpu_custom_call.1} parent=1 // pred_check_branch
      %12 = sbr.rel (0) target = $region5
    $region4: #{tpu_custom_call.1} parent=1 // pred_region
      %s14 = ssub.s32 128, 128
      %15 = vsyncadd [#allocation4], %s14
      %s17 = sshll.u32 [#allocation3], 4
      %s18 = int_to_ptr.vmem [resolvable:$true] %s17
      %20 = dma.hbm_to_vmem [thread:$0]  %s0, 128, %s18, [#allocation4]
    $region5: #{tpu_custom_call.1} parent=1 // pred_fallthru
      _
    // Predicated region
    $region6: #{tpu_custom_call.1} parent=1 // pred_check
      _
    $region7: #{tpu_custom_call.1} parent=1 // pred_check_branch
      %22 = sbr.rel (0) target = $region9
    $region8: #{tpu_custom_call.1} parent=1 // pred_region
      %s24 = ssub.s32 2048, 2048
      %25 = vsyncadd [#allocation7], %s24
      %s26 = sshll.u32 [#allocation6], 4
      %s27 = int_to_ptr.vmem [resolvable:$true] %s26
      %32 = dma.hbm_to_vmem [thread:$0]  %s1, 2048, %s27, [#allocation7], 128, 128, 8
    $region9: #{tpu_custom_call.1} parent=1 // pred_fallthru
      _
    // Predicated region
    $region10: #{tpu_custom_call.1} parent=1 // pred_check
      _
    $region11: #{tpu_custom_call.1} parent=1 // pred_check_branch
      %34 = sbr.rel (0) target = $region13
    $region12: #{tpu_custom_call.1} parent=1 // pred_region
      _
    $region13: #{tpu_custom_call.1} parent=1 // pred_fallthru
      _
    // Predicated region
    $region14: #{tpu_custom_call.1} parent=1 // pred_check
      _
    $region15: #{tpu_custom_call.1} parent=1 // pred_check_branch
      %36 = sbr.rel (0) target = $region17
    $region16: #{tpu_custom_call.1} parent=1 // pred_region
      %37 = dma.done [#allocation4], 128
    $region17: #{tpu_custom_call.1} parent=1 // pred_fallthru
      _
    // Predicated region
    $region18: #{tpu_custom_call.1} parent=1 // pred_check
      _
    $region19: #{tpu_custom_call.1} parent=1 // pred_check_branch
      %39 = sbr.rel (0) target = $region21
    $region20: #{tpu_custom_call.1} parent=1 // pred_region
      %40 = dma.done [#allocation7], 2048
    $region21: #{tpu_custom_call.1} parent=1 // pred_fallthru
      _
    %v41 = vld [vmem:[#allocation3] sm:$0xff]
    %v42 = vld [vmem:[#allocation6] sm:$0xff]
    %v43 = vld [vmem:[#allocation6 + $0x8] sm:$0xff]
    %v44 = vld [vmem:[#allocation6 + $0x10] sm:$0xff]
    %v45 = vld [vmem:[#allocation6 + $0x18] sm:$0xff]
    %v46 = vld [vmem:[#allocation6 + $0x20] sm:$0xff]
    %v47 = vld [vmem:[#allocation6 + $0x28] sm:$0xff]
    %v48 = vld [vmem:[#allocation6 + $0x30] sm:$0xff]
    %v49 = vld [vmem:[#allocation6 + $0x38] sm:$0xff]
    %v50 = vld [vmem:[#allocation6 + $0x40] sm:$0xff]
    %v51 = vld [vmem:[#allocation6 + $0x48] sm:$0xff]
    %v52 = vld [vmem:[#allocation6 + $0x50] sm:$0xff]
    %v53 = vld [vmem:[#allocation6 + $0x58] sm:$0xff]
    %v54 = vld [vmem:[#allocation6 + $0x60] sm:$0xff]
    %v55 = vld [vmem:[#allocation6 + $0x68] sm:$0xff]
    %v56 = vld [vmem:[#allocation6 + $0x70] sm:$0xff]
    %v57 = vld [vmem:[#allocation6 + $0x78] sm:$0xff]
    %58 = vmatprep.subr.mxu0 0.0
    %59 = vmatpush1.msra.mxu0 %v42
    %60 = vmatprep.subr.mxu0 0.0
    %61 = vmatpush1.msra.mxu0 %v43
    %62 = vmatprep.subr.mxu0 0.0
    %63 = vmatpush1.msra.mxu0 %v44
    %64 = vmatprep.subr.mxu0 0.0
    %65 = vmatpush1.msra.mxu0 %v45
    %66 = vmatprep.subr.mxu0 0.0
    %67 = vmatpush1.msra.mxu0 %v46
    %68 = vmatprep.subr.mxu0 0.0
    %69 = vmatpush1.msra.mxu0 %v47
    %70 = vmatprep.subr.mxu0 0.0
    %71 = vmatpush1.msra.mxu0 %v48
    %72 = vmatprep.subr.mxu0 0.0
    %73 = vmatpush1.msra.mxu0 %v49
    %74 = vmatprep.subr.mxu0 0.0
    %75 = vmatpush1.msra.mxu0 %v50
    %76 = vmatprep.subr.mxu0 0.0
    %77 = vmatpush1.msra.mxu0 %v51
    %78 = vmatprep.subr.mxu0 0.0
    %79 = vmatpush1.msra.mxu0 %v52
    %80 = vmatprep.subr.mxu0 0.0
    %81 = vmatpush1.msra.mxu0 %v53
    %82 = vmatprep.subr.mxu0 0.0
    %83 = vmatpush1.msra.mxu0 %v54
    %84 = vmatprep.subr.mxu0 0.0
    %85 = vmatpush1.msra.mxu0 %v55
    %86 = vmatprep.subr.mxu0 0.0
    %87 = vmatpush1.msra.mxu0 %v56
    %88 = vmatprep.subr.mxu0 0.0
    %89 = vmatpush1.msra.mxu0 %v57
    %90 = vmatprep.subr.mxu0 0.0
    %91 = vmatpush1.msra.mxu0 0.0
    %92 = vmatprep.subr.mxu0 0.0
    %93 = vmatpush1.msra.mxu0 0.0
    %94 = vmatprep.subr.mxu0 0.0
    %95 = vmatpush1.msra.mxu0 0.0
    %96 = vmatprep.subr.mxu0 0.0
    %97 = vmatpush1.msra.mxu0 0.0
    %98 = vmatprep.subr.mxu0 0.0
    %99 = vmatpush1.msra.mxu0 0.0
    %100 = vmatprep.subr.mxu0 0.0
    %101 = vmatpush1.msra.mxu0 0.0
    %102 = vmatprep.subr.mxu0 0.0
    %103 = vmatpush1.msra.mxu0 0.0
    %104 = vmatprep.subr.mxu0 0.0
    %105 = vmatpush1.msra.mxu0 0.0
    %106 = vmatprep.subr.mxu0 0.0
    %107 = vmatpush1.msra.mxu0 0.0
    %108 = vmatprep.subr.mxu0 0.0
    %109 = vmatpush1.msra.mxu0 0.0
    %110 = vmatprep.subr.mxu0 0.0
    %111 = vmatpush1.msra.mxu0 0.0
    %112 = vmatprep.subr.mxu0 0.0
    %113 = vmatpush1.msra.mxu0 0.0
    %114 = vmatprep.subr.mxu0 0.0
    %115 = vmatpush1.msra.mxu0 0.0
    %116 = vmatprep.subr.mxu0 0.0
    %117 = vmatpush1.msra.mxu0 0.0
    %118 = vmatprep.subr.mxu0 0.0
    %119 = vmatpush1.msra.mxu0 0.0
    %120 = vmatprep.subr.mxu0 0.0
    %121 = vmatpush1.msra.mxu0 0.0
    %122 = vmatprep.mubr.f32.mxu0 0.0
    %123 = vmatmul.mubr.f32.gmra.mrb[0].mxu0 %v41
    %v124 = vpop.f32.mrb[0].mxu0
    %v125 = vadd.f32 0.0, %v124
    %v126 = vpop.f32.mrb[0].mxu0
    %127 = vdwg.mxu0
    %p128 = scmp.eq.s32.totalorder 0, 0
    // Predicated region
    $region22: #{tpu_custom_call.1} parent=1 // pred_check
      %p129 = pneg %p128
    $region23: #{tpu_custom_call.1} parent=1 // pred_check_branch
      %131 = sbr.rel (%p129) target = $region25
    $region24: #{tpu_custom_call.1} parent=1 // pred_region
      %v132 = vld [vmem:[%s2] sm:$0x1]
      %v134 = vlaneseq
      %v135 = vshrl.u32 %v134, 7
      %v136 = vsub.s32 0, %v135
      %v137 = vrot.slane %v132, %v136
      %v139 = vadd.f32 %v137, %v125
      %140 = vst [vmem:[#allocation2] sm:$0xff] %v139
    $region25: #{tpu_custom_call.1} parent=1 // pred_fallthru
      _
    %p141 = scmp.ne.s32.totalorder 0, 0
    // Predicated region
    $region26: #{tpu_custom_call.1} parent=1 // pred_check
      %p142 = pneg %p141
    $region27: #{tpu_custom_call.1} parent=1 // pred_check_branch
      %144 = sbr.rel (%p142) target = $region29
    $region28: #{tpu_custom_call.1} parent=1 // pred_region
      %v145 = vld [vmem:[#allocation2] sm:$0xff]
      %v146 = vadd.f32 %v145, %v125
      %147 = vst [vmem:[#allocation2] sm:$0xff] %v146
    $region29: #{tpu_custom_call.1} parent=1 // pred_fallthru
      _
    // Predicated region
    $region30: #{tpu_custom_call.1} parent=1 // pred_check
      %p148 = pneg %p128
    $region31: #{tpu_custom_call.1} parent=1 // pred_check_branch
      %150 = sbr.rel (%p148) target = $region33
    $region32: #{tpu_custom_call.1} parent=1 // pred_region
      %v151 = vld [vmem:[#allocation2] sm:$0xff]
      %152 = vst [vmem:[#allocation8] sm:$0xff] %v151
    $region33: #{tpu_custom_call.1} parent=1 // pred_fallthru
      _
    // Predicated region
    $region34: #{tpu_custom_call.1} parent=1 // pred_check
      _
    $region35: #{tpu_custom_call.1} parent=1 // pred_check_branch
      %154 = sbr.rel (0) target = $region37
    $region36: #{tpu_custom_call.1} parent=1 // pred_region
      %s156 = ssub.s32 128, 128
      %157 = vsyncadd [#allocation5], %s156
      %s159 = sshll.u32 [#allocation8], 4
      %s160 = int_to_ptr.vmem [resolvable:$true] %s159
      %162 = dma.vmem_to_hbm [thread:$0]  %s160, 128, %s3, [#allocation5]
    $region37: #{tpu_custom_call.1} parent=1 // pred_fallthru
      _
    // Predicated region
    $region38: #{tpu_custom_call.1} parent=1 // pred_check
      _
    $region39: #{tpu_custom_call.1} parent=1 // pred_check_branch
      %164 = sbr.rel (0) target = $region41
    $region40: #{tpu_custom_call.1} parent=1 // pred_region
      %165 = dma.done [#allocation5], 128
    $region41: #{tpu_custom_call.1} parent=1 // pred_fallthru
      _
    %166 = vsyncpa [#allocation4], 1
    %167 = vsyncpa [#allocation7], 1
    %168 = vsyncpa [#allocation5], 1

</llo_original>
